<compile_context>
chip_gen: v7x
topology: tpu7x:2x2x1
jax: 0.10.0
libtpu: 0.0.40
codegen_flags: <defaults>
</compile_context>

<pallas_src>
import functools

import jax
import jax.numpy as jnp
from jax.experimental import pallas as pl
from jax.experimental.pallas import tpu as pltpu


def _mlp_head_kernel(x_ref, w0_ref, b0_ref, w1_ref, b1_ref, w2_ref, b2_ref,
                     o_ref, acc_ref):
    """K-tiled fc0 accumulation; fc1/fc2/normalize fused into the last K step.

    x_ref  : (bn, tk)      bf16 block of the flattened input
    w0_ref : (tk, 128)     bf16 block of fc0 weight
    b0_ref : (1, 128)      f32
    w1_ref : (128, 64)     f32
    b1_ref : (1, 64)       f32
    w2_ref : (64, C)       f32
    b2_ref : (1, C)        f32
    o_ref  : (bn, C)       f32 output block
    acc_ref: (bn, 128)     f32 VMEM accumulator for fc0
    """
    k = pl.program_id(1)

    @pl.when(k == 0)
    def _():
        acc_ref[...] = jnp.zeros_like(acc_ref)

    # fc0 partial product on the MXU, f32 accumulation.
    acc_ref[...] += jnp.dot(x_ref[...], w0_ref[...],
                            preferred_element_type=jnp.float32)

    @pl.when(k == pl.num_programs(1) - 1)
    def _():
        # fc0 bias + ReLU
        h0 = jnp.maximum(acc_ref[...] + b0_ref[...], 0.0)
        # fc1 + ReLU
        h1 = jnp.dot(h0, w1_ref[...], preferred_element_type=jnp.float32)
        h1 = jnp.maximum(h1 + b1_ref[...], 0.0)
        # fc2
        f = jnp.dot(h1, w2_ref[...], preferred_element_type=jnp.float32)
        f = f + b2_ref[...]
        # F.normalize(f, dim=1): f / max(||f||, 1e-12)  ==  f * rsqrt(max(||f||^2, 1e-24))
        sumsq = jnp.sum(f * f, axis=1, keepdims=True)
        o_ref[...] = f * jax.lax.rsqrt(jnp.maximum(sumsq, 1e-24))


def sp_mlp_classifier(x_flat, w0, b0, w1, b1, w2, b2, *, tk=512):
    """x_flat: (N, K) f32; w0: (K, 128); w1: (128, 64); w2: (64, C)."""
    N, K = x_flat.shape
    assert w0.shape[0] == K, "flatten_dim mismatch with fc0 weight"
    H0 = w0.shape[1]          # 128
    H1 = w1.shape[1]          # 64
    C = w2.shape[1]           # num_classes

    # Pad the flatten (reduction) dim to a multiple of the K tile; zero padding
    # contributes nothing to the accumulation so semantics are unchanged.
    tk = min(tk, max(128, ((K + 127) // 128) * 128))
    Kp = pl.cdiv(K, tk) * tk
    if Kp != K:
        x_flat = jnp.pad(x_flat, ((0, 0), (0, Kp - K)))
        w0 = jnp.pad(w0, ((0, Kp - K), (0, 0)))

    # Stream the big operands as bf16 (MXU-native); accumulate in f32.
    x_bf = x_flat.astype(jnp.bfloat16)
    w0_bf = w0.astype(jnp.bfloat16)

    bn = N                       # demo batch is tiny; one batch block
    grid = (pl.cdiv(N, bn), Kp // tk)

    return pl.pallas_call(
        _mlp_head_kernel,
        out_shape=jax.ShapeDtypeStruct((N, C), jnp.float32),
        grid_spec=pltpu.PrefetchScalarGridSpec(
            num_scalar_prefetch=0,
            grid=grid,
            in_specs=[
                pl.BlockSpec((bn, tk), lambda i, k: (i, k)),     # x block
                pl.BlockSpec((tk, H0), lambda i, k: (k, 0)),     # fc0 weight block
                pl.BlockSpec((1, H0), lambda i, k: (0, 0)),      # b0
                pl.BlockSpec((H0, H1), lambda i, k: (0, 0)),     # fc1 weight
                pl.BlockSpec((1, H1), lambda i, k: (0, 0)),      # b1
                pl.BlockSpec((H1, C), lambda i, k: (0, 0)),      # fc2 weight
                pl.BlockSpec((1, C), lambda i, k: (0, 0)),       # b2
            ],
            out_specs=pl.BlockSpec((bn, C), lambda i, k: (i, 0)),
            scratch_shapes=[pltpu.VMEM((bn, H0), jnp.float32)],
        ),
        compiler_params=pltpu.CompilerParams(
            dimension_semantics=("parallel", "arbitrary")),
    )(x_bf, w0_bf,
      b0.reshape(1, -1).astype(jnp.float32),
      w1.astype(jnp.float32), b1.reshape(1, -1).astype(jnp.float32),
      w2.astype(jnp.float32), b2.reshape(1, -1).astype(jnp.float32))


def init_params(key, flatten_dim, num_classes=5):
    ks = jax.random.split(key, 6)
    return {
        "fc0_w": jax.random.normal(ks[0], (flatten_dim, 128), jnp.float32) * 0.02,
        "fc0_b": jax.random.normal(ks[1], (128,), jnp.float32) * 0.01,
        "fc1_w": jax.random.normal(ks[2], (128, 64), jnp.float32) * 0.05,
        "fc1_b": jax.random.normal(ks[3], (64,), jnp.float32) * 0.01,
        "fc2_w": jax.random.normal(ks[4], (64, num_classes), jnp.float32) * 0.05,
        "fc2_b": jax.random.normal(ks[5], (num_classes,), jnp.float32) * 0.01,
    }


@functools.partial(jax.jit, static_argnames=("tk",))
def sp_mlp_classifier_forward(features, params, *, tk=512):
    # features.view(N, -1): NCHW contiguous flatten == plain reshape.
    n = features.shape[0]
    x_flat = features.reshape(n, -1).astype(jnp.float32)
    return sp_mlp_classifier(
        x_flat,
        params["fc0_w"], params["fc0_b"],
        params["fc1_w"], params["fc1_b"],
        params["fc2_w"], params["fc2_b"],
        tk=tk)


if __name__ == "__main__":
    key = jax.random.PRNGKey(0)
    k_param, k_x = jax.random.split(key)

    # Small shapes consistent with the module: 32 channels (as in 32*125*125),
    # 8x8 spatial -> flatten_dim = 32*8*8 = 2048, K-tiled at tk=512 (4 steps).
    N, C_in, S = 2, 32, 8
    num_classes = 5
    flatten_dim = C_in * S * S

    params = init_params(k_param, flatten_dim, num_classes=num_classes)
    x = jax.random.normal(k_x, (N, C_in, S, S), jnp.float32)

    feat = sp_mlp_classifier_forward(x, params, tk=512)
    feat = jax.block_until_ready(feat)

    assert feat.shape == (N, num_classes)
    assert bool(jnp.all(jnp.isfinite(feat)))
    # Rows are L2-normalized.
    norms = jnp.sqrt(jnp.sum(feat * feat, axis=1))
    assert bool(jnp.all(jnp.abs(norms - 1.0) < 1e-3))
    print("KERNEL_OK")
</pallas_src>

<mosaic_0001>
module attributes {stable_mosaic.version = 11 : i64} {
  func.func @_mlp_head_kernel(%arg0: i32, %arg1: i32, %arg2: memref<2x512xbf16, #tpu.memory_space<vmem>>, %arg3: memref<512x128xbf16, #tpu.memory_space<vmem>>, %arg4: memref<1x128xf32, #tpu.memory_space<vmem>>, %arg5: memref<128x64xf32, #tpu.memory_space<vmem>>, %arg6: memref<1x64xf32, #tpu.memory_space<vmem>>, %arg7: memref<64x5xf32, #tpu.memory_space<vmem>>, %arg8: memref<1x5xf32, #tpu.memory_space<vmem>>, %arg9: memref<2x5xf32, #tpu.memory_space<vmem>>, %arg10: memref<2x128xf32, #tpu.memory_space<vmem>>) attributes {dimension_semantics = [#tpu.dimension_semantics<parallel>, #tpu.dimension_semantics<arbitrary>], iteration_bounds = array<i64: 1, 4>, scalar_prefetch = 0 : i64, scratch_operands = 1 : i64, tpu.core_type = #tpu.core_type<tc>, window_params = [{transform_indices = @transform_0, window_bounds = array<i64: 2, 512>}, {transform_indices = @transform_1, window_bounds = array<i64: 512, 128>}, {pipeline_mode = #tpu.pipeline_mode<synchronous>, transform_indices = @transform_2, window_bounds = array<i64: 1, 128>}, {pipeline_mode = #tpu.pipeline_mode<synchronous>, transform_indices = @transform_3, window_bounds = array<i64: 128, 64>}, {pipeline_mode = #tpu.pipeline_mode<synchronous>, transform_indices = @transform_4, window_bounds = array<i64: 1, 64>}, {pipeline_mode = #tpu.pipeline_mode<synchronous>, transform_indices = @transform_5, window_bounds = array<i64: 64, 5>}, {pipeline_mode = #tpu.pipeline_mode<synchronous>, transform_indices = @transform_6, window_bounds = array<i64: 1, 5>}, {transform_indices = @transform_7, window_bounds = array<i64: 2, 5>}]} {
    %c0_i32 = arith.constant 0 : i32
    %0 = arith.cmpi eq, %arg1, %c0_i32 : i32
    %1 = arith.extui %0 : i1 to i32
    %c0_i32_0 = arith.constant 0 : i32
    %2 = arith.cmpi ne, %1, %c0_i32_0 : i32
    scf.if %2 {
      %cst_9 = arith.constant 0.000000e+00 : f32
      %12 = vector.broadcast %cst_9 : f32 to vector<2x128xf32>
      %c0_10 = arith.constant 0 : index
      %c0_11 = arith.constant 0 : index
      %13 = vector.load %arg10[%c0_10, %c0_11] : memref<2x128xf32, #tpu.memory_space<vmem>>, vector<2x128xf32>
      tpu.vector_store %arg10[%c0_10, %c0_11], %12 {strides = array<i32>} : memref<2x128xf32, #tpu.memory_space<vmem>>, vector<2x128xf32>,
    } else {
    }
    %c0 = arith.constant 0 : index
    %c0_1 = arith.constant 0 : index
    %3 = vector.load %arg10[%c0, %c0_1] : memref<2x128xf32, #tpu.memory_space<vmem>>, vector<2x128xf32>
    %c0_2 = arith.constant 0 : index
    %c0_3 = arith.constant 0 : index
    %4 = vector.load %arg2[%c0_2, %c0_3] : memref<2x512xbf16, #tpu.memory_space<vmem>>, vector<2x512xbf16>
    %c0_4 = arith.constant 0 : index
    %c0_5 = arith.constant 0 : index
    %5 = vector.load %arg3[%c0_4, %c0_5] : memref<512x128xbf16, #tpu.memory_space<vmem>>, vector<512x128xbf16>
    %cst = arith.constant dense<0.000000e+00> : vector<2x128xf32>
    %6 = tpu.matmul %4, %5, %cst {dimension_numbers = #tpu.dot_dimension_numbers<[1], [0], [0], [1], [0, 0, 1, 1], [], []>} : vector<2x512xbf16>, vector<512x128xbf16>, vector<2x128xf32> -> vector<2x128xf32>
    %7 = arith.addf %3, %6 : vector<2x128xf32>
    %c0_6 = arith.constant 0 : index
    %c0_7 = arith.constant 0 : index
    %8 = vector.load %arg10[%c0_6, %c0_7] : memref<2x128xf32, #tpu.memory_space<vmem>>, vector<2x128xf32>
    tpu.vector_store %arg10[%c0_6, %c0_7], %7 {strides = array<i32>} : memref<2x128xf32, #tpu.memory_space<vmem>>, vector<2x128xf32>,
    %c3_i32 = arith.constant 3 : i32
    %9 = arith.cmpi eq, %arg1, %c3_i32 : i32
    %10 = arith.extui %9 : i1 to i32
    %c0_i32_8 = arith.constant 0 : i32
    %11 = arith.cmpi ne, %10, %c0_i32_8 : i32
    scf.if %11 {
      %c0_9 = arith.constant 0 : index
      %c0_10 = arith.constant 0 : index
      %12 = vector.load %arg10[%c0_9, %c0_10] : memref<2x128xf32, #tpu.memory_space<vmem>>, vector<2x128xf32>
      %c0_11 = arith.constant 0 : index
      %c0_12 = arith.constant 0 : index
      %13 = vector.load %arg4[%c0_11, %c0_12] : memref<1x128xf32, #tpu.memory_space<vmem>>, vector<1x128xf32>
      %14 = vector.broadcast %13 : vector<1x128xf32> to vector<2x128xf32>
      %15 = arith.addf %12, %14 : vector<2x128xf32>
      %cst_13 = arith.constant 0.000000e+00 : f32
      %16 = vector.broadcast %cst_13 : f32 to vector<2x128xf32>
      %17 = arith.maximumf %15, %16 : vector<2x128xf32>
      %c0_14 = arith.constant 0 : index
      %c0_15 = arith.constant 0 : index
      %18 = vector.load %arg5[%c0_14, %c0_15] : memref<128x64xf32, #tpu.memory_space<vmem>>, vector<128x64xf32>
      %cst_16 = arith.constant dense<0.000000e+00> : vector<2x64xf32>
      %19 = tpu.matmul %17, %18, %cst_16 {dimension_numbers = #tpu.dot_dimension_numbers<[1], [0], [0], [1], [0, 0, 1, 1], [], []>} : vector<2x128xf32>, vector<128x64xf32>, vector<2x64xf32> -> vector<2x64xf32>
      %c0_17 = arith.constant 0 : index
      %c0_18 = arith.constant 0 : index
      %20 = vector.load %arg6[%c0_17, %c0_18] : memref<1x64xf32, #tpu.memory_space<vmem>>, vector<1x64xf32>
      %21 = vector.broadcast %20 : vector<1x64xf32> to vector<2x64xf32>
      %22 = arith.addf %19, %21 : vector<2x64xf32>
      %cst_19 = arith.constant 0.000000e+00 : f32
      %23 = vector.broadcast %cst_19 : f32 to vector<2x64xf32>
      %24 = arith.maximumf %22, %23 : vector<2x64xf32>
      %c0_20 = arith.constant 0 : index
      %c0_21 = arith.constant 0 : index
      %25 = vector.load %arg7[%c0_20, %c0_21] : memref<64x5xf32, #tpu.memory_space<vmem>>, vector<64x5xf32>
      %cst_22 = arith.constant dense<0.000000e+00> : vector<2x5xf32>
      %26 = tpu.matmul %24, %25, %cst_22 {dimension_numbers = #tpu.dot_dimension_numbers<[1], [0], [0], [1], [0, 0, 1, 1], [], []>} : vector<2x64xf32>, vector<64x5xf32>, vector<2x5xf32> -> vector<2x5xf32>
      %c0_23 = arith.constant 0 : index
      %c0_24 = arith.constant 0 : index
      %27 = vector.load %arg8[%c0_23, %c0_24] : memref<1x5xf32, #tpu.memory_space<vmem>>, vector<1x5xf32>
      %28 = vector.broadcast %27 : vector<1x5xf32> to vector<2x5xf32>
      %29 = arith.addf %26, %28 : vector<2x5xf32>
      %30 = arith.mulf %29, %29 : vector<2x5xf32>
      %cst_25 = arith.constant dense<0.000000e+00> : vector<2xf32>
      %31 = vector.multi_reduction <add>, %30, %cst_25 [1] : vector<2x5xf32> to vector<2xf32>
      %32 = vector.shape_cast %31 : vector<2xf32> to vector<2x1xf32>
      %cst_26 = arith.constant 1.000000e-24 : f32
      %33 = vector.broadcast %cst_26 : f32 to vector<2x1xf32>
      %34 = arith.maximumf %32, %33 : vector<2x1xf32>
      %35 = math.rsqrt %34 : vector<2x1xf32>
      %36 = vector.broadcast %35 : vector<2x1xf32> to vector<2x5xf32>
      %37 = arith.mulf %29, %36 : vector<2x5xf32>
      %c0_27 = arith.constant 0 : index
      %c0_28 = arith.constant 0 : index
      %38 = vector.load %arg9[%c0_27, %c0_28] : memref<2x5xf32, #tpu.memory_space<vmem>>, vector<2x5xf32>
      tpu.vector_store %arg9[%c0_27, %c0_28], %37 {strides = array<i32>} : memref<2x5xf32, #tpu.memory_space<vmem>>, vector<2x5xf32>,
    } else {
    }
    return
  }
  func.func @transform_0(%arg0: i32, %arg1: i32) -> (i32, i32) {
    %c0_i32 = arith.constant 0 : i32
    return %arg0, %arg1 : i32, i32
  }
  func.func @transform_1(%arg0: i32, %arg1: i32) -> (i32, i32) {
    %c0_i32 = arith.constant 0 : i32
    %c0_i32_0 = arith.constant 0 : i32
    return %arg1, %c0_i32 : i32, i32
  }
  func.func @transform_2(%arg0: i32, %arg1: i32) -> (i32, i32) {
    %c0_i32 = arith.constant 0 : i32
    %c0_i32_0 = arith.constant 0 : i32
    %c0_i32_1 = arith.constant 0 : i32
    return %c0_i32, %c0_i32_0 : i32, i32
  }
  func.func @transform_3(%arg0: i32, %arg1: i32) -> (i32, i32) {
    %c0_i32 = arith.constant 0 : i32
    %c0_i32_0 = arith.constant 0 : i32
    %c0_i32_1 = arith.constant 0 : i32
    return %c0_i32, %c0_i32_0 : i32, i32
  }
  func.func @transform_4(%arg0: i32, %arg1: i32) -> (i32, i32) {
    %c0_i32 = arith.constant 0 : i32
    %c0_i32_0 = arith.constant 0 : i32
    %c0_i32_1 = arith.constant 0 : i32
    return %c0_i32, %c0_i32_0 : i32, i32
  }
  func.func @transform_5(%arg0: i32, %arg1: i32) -> (i32, i32) {
    %c0_i32 = arith.constant 0 : i32
    %c0_i32_0 = arith.constant 0 : i32
    %c0_i32_1 = arith.constant 0 : i32
    return %c0_i32, %c0_i32_0 : i32, i32
  }
  func.func @transform_6(%arg0: i32, %arg1: i32) -> (i32, i32) {
    %c0_i32 = arith.constant 0 : i32
    %c0_i32_0 = arith.constant 0 : i32
    %c0_i32_1 = arith.constant 0 : i32
    return %c0_i32, %c0_i32_0 : i32, i32
  }
  func.func @transform_7(%arg0: i32, %arg1: i32) -> (i32, i32) {
    %c0_i32 = arith.constant 0 : i32
    %c0_i32_0 = arith.constant 0 : i32
    return %arg0, %c0_i32 : i32, i32
  }
}

</mosaic_0001>

<llo_original>
// kernel: sp_mlp_classifier_forward.1
$region0: #{sp_mlp_classifier_forward.1}
  #allocation0 [shape = 'u32[]', space=smem, size = 0x4, offset = 0x4, fixed_abs, tag = 'smem constant byte address 0x4 - core index']
  #allocation1 [shape = 'u32[144,128]{1,0:T(1,128)}', space=vmem, size = 0x12000, scoped, tag = 'internal scratch']
  #allocation2 [shape = 'f32[2,128]{1,0:T(2,128)}', space=vmem, size = 0x400, scoped, tag = 'scratch operand']
  %s0 = inlined_call_operand.vmem [shape: bf16[2,2048], index: 0, kind: input, shape index: {}]
  %s1 = inlined_call_operand.vmem [shape: bf16[2048,128], index: 1, kind: input, shape index: {}]
  %s2 = inlined_call_operand.vmem [shape: f32[1,128], index: 2, kind: input, shape index: {}]
  %s3 = inlined_call_operand.vmem [shape: f32[128,64], index: 3, kind: input, shape index: {}]
  %s4 = inlined_call_operand.vmem [shape: f32[1,64], index: 4, kind: input, shape index: {}]
  %s5 = inlined_call_operand.vmem [shape: f32[64,5], index: 5, kind: input, shape index: {}]
  %s6 = inlined_call_operand.vmem [shape: f32[1,5], index: 6, kind: input, shape index: {}]
  %s7 = inlined_call_operand.hbm [shape: f32[2,5], index: 7, kind: output, shape index: {}]
  %s8 = sld [smem:[#allocation0]]
  $region69: #{sp_mlp_classifier_forward.1} parent=0
    _
  %s10 = ssub.s32 1, %s8
  %s11 = scalar_select 0, %s10, %s8
  $region1: #{sp_mlp_classifier_forward.1} parent=0
    #allocation3 [shape = 'u8[1024]{0}', space=vmem, size = 0x400, scoped, tag = 'output window, operand 0, single buffered']
    #allocation4 [shape = 's32[2]{0}', space=sflag, size = 0x8, scoped, tag = 'scoped memory for sp_mlp_classifier_forward.1']
    %12 = vsyncpa [#allocation4], 0
    loop: start=0, step=1, limit=6
    $region2: #{sp_mlp_classifier_forward.1} parent=1 // loop_pre_header
      _
    $region3: #{sp_mlp_classifier_forward.1} parent=1 // loop_header
      %s14 = sphi 0, %s18
      %p15 = scmp.ge.s32.totalorder %s14, 6
      %s21 = sphi 0, %s33
      %s22 = sphi 0, %s29
      %s23 = sphi 0, %s21
      %s24 = sphi 0, %s22
      %s25 = sphi 0, %s23
      %s26 = sphi 0, %s24
      %s38 = sphi 0, %s40
      %s41 = sphi 0, %s38
      %s42 = sphi 0, %s41
      %s58 = sphi 0, %s42
      %s64 = sphi 0, %s66
      %s67 = sphi 0, %s64
      %s68 = sphi 0, %s67
      %s84 = sphi 0, %s68
      %s88 = sphi 0, %s88
      %s90 = sphi 0, %s88
      %s91 = sphi 0, %s90
      %s105 = sphi 0, %s91
      %s109 = sphi 0, %s109
      %s111 = sphi 0, %s109
      %s112 = sphi 0, %s111
      %s126 = sphi 0, %s112
      %s130 = sphi 0, %s130
      %s132 = sphi 0, %s130
      %s133 = sphi 0, %s132
      %s147 = sphi 0, %s133
      %s151 = sphi 0, %s151
      %s153 = sphi 0, %s151
      %s154 = sphi 0, %s153
      %s168 = sphi 0, %s154
      %s172 = sphi 0, %s172
      %s174 = sphi 0, %s172
      %s175 = sphi 0, %s174
      %s189 = sphi 0, %s175
      %s195 = sphi 0, %s197
      %s198 = sphi 0, %s195
      %s199 = sphi 0, %s198
      %s215 = sphi 0, %s199
    $region4: #{sp_mlp_classifier_forward.1} parent=1 // loop_header_branch
      %17 = sbr.rel (%p15) target = $region8
    $region5: #{sp_mlp_classifier_forward.1} parent=1 // loop_body
      %s19 = ssub.s32 %s14, 1
      %s20 = ssub.s32 %s14, 2
      %s27 = sadd.s32 1, %s22
      %p28 = scmp.ge.s32.totalorder %s27, 4
      %s29 = scalar_select %p28, 0, %s27
      %s30 = sadd.s32 1, %s21
      %s31 = scalar_select %p28, %s30, %s21
      %p32 = scmp.ge.s32.totalorder %s31, 1
      %s33 = scalar_select %p32, 0, %s31
      %s34 = ssub.s32 %s21, %s33
      %s35 = ssub.s32 %s22, %s29
      %s36 = sor.u32 %s34, %s35
      %p37 = scmp.eq.s32.totalorder %s36, 0
      %s39 = sadd.s32 %s38, 1
      %s40 = scalar_select %p37, %s38, %s39
      %p43 = pneg %p37
      %p44 = scmp.eq.s32.totalorder %s14, 3
      %p45 = por %p43, %p44
      %p46 = scmp.ne.s32.totalorder %s38, %s41
      %p47 = scmp.eq.s32.totalorder %s14, 0
      %p48 = por %p46, %p47
      %p49 = scmp.ne.s32.totalorder %s38, %s41
      %p50 = scmp.eq.s32.totalorder %s19, 3
      %p51 = por %p49, %p50
      %p52 = scmp.ne.s32.totalorder %s41, %s42
      %p53 = scmp.eq.s32.totalorder %s19, 0
      %p54 = por %p52, %p53
      %p55 = scmp.ne.s32.totalorder %s41, %s42
      %p56 = scmp.eq.s32.totalorder %s20, 3
      %p57 = por %p55, %p56
      %p59 = scmp.ne.s32.totalorder %s42, %s58
      %p60 = scmp.eq.s32.totalorder %s20, 0
      %p61 = por %p59, %p60
      %s62 = ssub.s32 %s22, %s29
      %p63 = scmp.eq.s32.totalorder %s62, 0
      %s65 = sadd.s32 %s64, 1
      %s66 = scalar_select %p63, %s64, %s65
      %p69 = pneg %p63
      %p70 = scmp.eq.s32.totalorder %s14, 3
      %p71 = por %p69, %p70
      %p72 = scmp.ne.s32.totalorder %s64, %s67
      %p73 = scmp.eq.s32.totalorder %s14, 0
      %p74 = por %p72, %p73
      %p75 = scmp.ne.s32.totalorder %s64, %s67
      %p76 = scmp.eq.s32.totalorder %s19, 3
      %p77 = por %p75, %p76
      %p78 = scmp.ne.s32.totalorder %s67, %s68
      %p79 = scmp.eq.s32.totalorder %s19, 0
      %p80 = por %p78, %p79
      %p81 = scmp.ne.s32.totalorder %s67, %s68
      %p82 = scmp.eq.s32.totalorder %s20, 3
      %p83 = por %p81, %p82
      %p85 = scmp.ne.s32.totalorder %s68, %s84
      %p86 = scmp.eq.s32.totalorder %s20, 0
      %p87 = por %p85, %p86
      %s89 = sadd.s32 %s88, 1
      %p92 = scmp.eq.s32.totalorder %s14, 3
      %p93 = scmp.ne.s32.totalorder %s88, %s90
      %p94 = scmp.eq.s32.totalorder %s14, 0
      %p95 = por %p93, %p94
      %p96 = scmp.ne.s32.totalorder %s88, %s90
      %p97 = scmp.eq.s32.totalorder %s19, 3
      %p98 = por %p96, %p97
      %p99 = scmp.ne.s32.totalorder %s90, %s91
      %p100 = scmp.eq.s32.totalorder %s19, 0
      %p101 = por %p99, %p100
      %p102 = scmp.ne.s32.totalorder %s90, %s91
      %p103 = scmp.eq.s32.totalorder %s20, 3
      %p104 = por %p102, %p103
      %p106 = scmp.ne.s32.totalorder %s91, %s105
      %p107 = scmp.eq.s32.totalorder %s20, 0
      %p108 = por %p106, %p107
      %s110 = sadd.s32 %s109, 1
      %p113 = scmp.eq.s32.totalorder %s14, 3
      %p114 = scmp.ne.s32.totalorder %s109, %s111
      %p115 = scmp.eq.s32.totalorder %s14, 0
      %p116 = por %p114, %p115
      %p117 = scmp.ne.s32.totalorder %s109, %s111
      %p118 = scmp.eq.s32.totalorder %s19, 3
      %p119 = por %p117, %p118
      %p120 = scmp.ne.s32.totalorder %s111, %s112
      %p121 = scmp.eq.s32.totalorder %s19, 0
      %p122 = por %p120, %p121
      %p123 = scmp.ne.s32.totalorder %s111, %s112
      %p124 = scmp.eq.s32.totalorder %s20, 3
      %p125 = por %p123, %p124
      %p127 = scmp.ne.s32.totalorder %s112, %s126
      %p128 = scmp.eq.s32.totalorder %s20, 0
      %p129 = por %p127, %p128
      %s131 = sadd.s32 %s130, 1
      %p134 = scmp.eq.s32.totalorder %s14, 3
      %p135 = scmp.ne.s32.totalorder %s130, %s132
      %p136 = scmp.eq.s32.totalorder %s14, 0
      %p137 = por %p135, %p136
      %p138 = scmp.ne.s32.totalorder %s130, %s132
      %p139 = scmp.eq.s32.totalorder %s19, 3
      %p140 = por %p138, %p139
      %p141 = scmp.ne.s32.totalorder %s132, %s133
      %p142 = scmp.eq.s32.totalorder %s19, 0
      %p143 = por %p141, %p142
      %p144 = scmp.ne.s32.totalorder %s132, %s133
      %p145 = scmp.eq.s32.totalorder %s20, 3
      %p146 = por %p144, %p145
      %p148 = scmp.ne.s32.totalorder %s133, %s147
      %p149 = scmp.eq.s32.totalorder %s20, 0
      %p150 = por %p148, %p149
      %s152 = sadd.s32 %s151, 1
      %p155 = scmp.eq.s32.totalorder %s14, 3
      %p156 = scmp.ne.s32.totalorder %s151, %s153
      %p157 = scmp.eq.s32.totalorder %s14, 0
      %p158 = por %p156, %p157
      %p159 = scmp.ne.s32.totalorder %s151, %s153
      %p160 = scmp.eq.s32.totalorder %s19, 3
      %p161 = por %p159, %p160
      %p162 = scmp.ne.s32.totalorder %s153, %s154
      %p163 = scmp.eq.s32.totalorder %s19, 0
      %p164 = por %p162, %p163
      %p165 = scmp.ne.s32.totalorder %s153, %s154
      %p166 = scmp.eq.s32.totalorder %s20, 3
      %p167 = por %p165, %p166
      %p169 = scmp.ne.s32.totalorder %s154, %s168
      %p170 = scmp.eq.s32.totalorder %s20, 0
      %p171 = por %p169, %p170
      %s173 = sadd.s32 %s172, 1
      %p176 = scmp.eq.s32.totalorder %s14, 3
      %p177 = scmp.ne.s32.totalorder %s172, %s174
      %p178 = scmp.eq.s32.totalorder %s14, 0
      %p179 = por %p177, %p178
      %p180 = scmp.ne.s32.totalorder %s172, %s174
      %p181 = scmp.eq.s32.totalorder %s19, 3
      %p182 = por %p180, %p181
      %p183 = scmp.ne.s32.totalorder %s174, %s175
      %p184 = scmp.eq.s32.totalorder %s19, 0
      %p185 = por %p183, %p184
      %p186 = scmp.ne.s32.totalorder %s174, %s175
      %p187 = scmp.eq.s32.totalorder %s20, 3
      %p188 = por %p186, %p187
      %p190 = scmp.ne.s32.totalorder %s175, %s189
      %p191 = scmp.eq.s32.totalorder %s20, 0
      %p192 = por %p190, %p191
      %s193 = ssub.s32 %s21, %s33
      %p194 = scmp.eq.s32.totalorder %s193, 0
      %s196 = sadd.s32 %s195, 1
      %s197 = scalar_select %p194, %s195, %s196
      %p200 = pneg %p194
      %p201 = scmp.eq.s32.totalorder %s14, 3
      %p202 = por %p200, %p201
      %p203 = scmp.ne.s32.totalorder %s195, %s198
      %p204 = scmp.eq.s32.totalorder %s14, 0
      %p205 = por %p203, %p204
      %p206 = scmp.ne.s32.totalorder %s195, %s198
      %p207 = scmp.eq.s32.totalorder %s19, 3
      %p208 = por %p206, %p207
      %p209 = scmp.ne.s32.totalorder %s198, %s199
      %p210 = scmp.eq.s32.totalorder %s19, 0
      %p211 = por %p209, %p210
      %p212 = scmp.ne.s32.totalorder %s198, %s199
      %p213 = scmp.eq.s32.totalorder %s20, 3
      %p214 = por %p212, %p213
      %p216 = scmp.ne.s32.totalorder %s199, %s215
      %p217 = scmp.eq.s32.totalorder %s20, 0
      %p218 = por %p216, %p217
      %p219 = scmp.le.s32.totalorder 1, %s14
      %p220 = scmp.lt.s32.totalorder %s14, 5
      %p221 = pnand %p219, %p220
      %p222 = pneg %p221
      // Predicated region
      $region9: #{sp_mlp_classifier_forward.1} parent=5 // pred_check
        _
      $region10: #{sp_mlp_classifier_forward.1} parent=5 // pred_check_branch
        %224 = sbr.rel (%p221) target = $region12
      $region11: #{sp_mlp_classifier_forward.1} parent=5 // pred_region
        %s225 = ssub.s32 %s14, 1
        // Predicated region
        $region13: #{sp_mlp_classifier_forward.1} parent=11 // pred_check
          %p226 = pneg %p101
        $region14: #{sp_mlp_classifier_forward.1} parent=11 // pred_check_branch
          %228 = sbr.rel (%p226) target = $region16
        $region15: #{sp_mlp_classifier_forward.1} parent=11 // pred_region
          _
        $region16: #{sp_mlp_classifier_forward.1} parent=11 // pred_fallthru
          _
        // Predicated region
        $region17: #{sp_mlp_classifier_forward.1} parent=11 // pred_check
          %p229 = pneg %p122
        $region18: #{sp_mlp_classifier_forward.1} parent=11 // pred_check_branch
          %231 = sbr.rel (%p229) target = $region20
        $region19: #{sp_mlp_classifier_forward.1} parent=11 // pred_region
          _
        $region20: #{sp_mlp_classifier_forward.1} parent=11 // pred_fallthru
          _
        // Predicated region
        $region21: #{sp_mlp_classifier_forward.1} parent=11 // pred_check
          %p232 = pneg %p143
        $region22: #{sp_mlp_classifier_forward.1} parent=11 // pred_check_branch
          %234 = sbr.rel (%p232) target = $region24
        $region23: #{sp_mlp_classifier_forward.1} parent=11 // pred_region
          _
        $region24: #{sp_mlp_classifier_forward.1} parent=11 // pred_fallthru
          _
        // Predicated region
        $region25: #{sp_mlp_classifier_forward.1} parent=11 // pred_check
          %p235 = pneg %p164
        $region26: #{sp_mlp_classifier_forward.1} parent=11 // pred_check_branch
          %237 = sbr.rel (%p235) target = $region28
        $region27: #{sp_mlp_classifier_forward.1} parent=11 // pred_region
          _
        $region28: #{sp_mlp_classifier_forward.1} parent=11 // pred_fallthru
          _
        // Predicated region
        $region29: #{sp_mlp_classifier_forward.1} parent=11 // pred_check
          %p238 = pneg %p185
        $region30: #{sp_mlp_classifier_forward.1} parent=11 // pred_check_branch
          %240 = sbr.rel (%p238) target = $region32
        $region31: #{sp_mlp_classifier_forward.1} parent=11 // pred_region
          _
        $region32: #{sp_mlp_classifier_forward.1} parent=11 // pred_fallthru
          _
      $region12: #{sp_mlp_classifier_forward.1} parent=5 // pred_fallthru
        _
      %p241 = scmp.lt.s32.totalorder %s14, 4
      // Predicated region
      $region33: #{sp_mlp_classifier_forward.1} parent=5 // pred_check
        %p242 = pneg %p241
      $region34: #{sp_mlp_classifier_forward.1} parent=5 // pred_check_branch
        %244 = sbr.rel (%p242) target = $region36
      $region35: #{sp_mlp_classifier_forward.1} parent=5 // pred_region
        // Predicated region
        $region37: #{sp_mlp_classifier_forward.1} parent=35 // pred_check
          %p245 = pneg %p48
        $region38: #{sp_mlp_classifier_forward.1} parent=35 // pred_check_branch
          %247 = sbr.rel (%p245) target = $region40
        $region39: #{sp_mlp_classifier_forward.1} parent=35 // pred_region
          %s248 = smul.u32 4, %s22
          %p249 = scmp.lt.s32.totalorder %s21, 0
          %s250 = scalar_select %p249, %s21, 0
          %p251 = scmp.lt.s32.totalorder %s248, 15
          %s252 = scalar_select %p251, %s248, 15
          %s253 = smul.addr %s250, 16
          %s254 = sadd.s32 %s252, %s253
          %s255 = scalar_lea.vmem %s0, %s254
          %s256 = smul.u32 4, %s22
        $region40: #{sp_mlp_classifier_forward.1} parent=35 // pred_fallthru
          _
        // Predicated region
        $region41: #{sp_mlp_classifier_forward.1} parent=35 // pred_check
          %p257 = pneg %p74
        $region42: #{sp_mlp_classifier_forward.1} parent=35 // pred_check_branch
          %259 = sbr.rel (%p257) target = $region44
        $region43: #{sp_mlp_classifier_forward.1} parent=35 // pred_region
          %s260 = smul.u32 64, %s22
          %p261 = scmp.lt.s32.totalorder %s260, 255
          %s262 = scalar_select %p261, %s260, 255
          %s263 = smul.addr %s262, 4
          %s264 = scalar_lea.vmem %s1, %s263
          %s265 = smul.u32 64, %s22
        $region44: #{sp_mlp_classifier_forward.1} parent=35 // pred_fallthru
          _
      $region36: #{sp_mlp_classifier_forward.1} parent=5 // pred_fallthru
        _
      %p266 = scmp.le.s32.totalorder 1, %s14
      %p267 = scmp.lt.s32.totalorder %s14, 5
      %p268 = pnand %p266, %p267
      %p269 = pneg %p268
      // Predicated region
      $region45: #{sp_mlp_classifier_forward.1} parent=5 // pred_check
        _
      $region46: #{sp_mlp_classifier_forward.1} parent=5 // pred_check_branch
        %271 = sbr.rel (%p268) target = $region48
      $region47: #{sp_mlp_classifier_forward.1} parent=5 // pred_region
        %s272 = ssub.s32 %s14, 1
        %s273 = smul.u32 4, %s24
        %p274 = scmp.lt.s32.totalorder %s23, 0
        %s275 = scalar_select %p274, %s23, 0
        %p276 = scmp.lt.s32.totalorder %s273, 15
        %s277 = scalar_select %p276, %s273, 15
        %s278 = smul.addr %s275, 16
        %s279 = sadd.s32 %s277, %s278
        %s280 = scalar_lea.vmem %s0, %s279
        %p281 = pneg %p54
        %p282 = pneg %p51
        %s283 = smul.u32 64, %s24
        %p284 = scmp.lt.s32.totalorder %s283, 255
        %s285 = scalar_select %p284, %s283, 255
        %s286 = smul.addr %s285, 4
        %s287 = scalar_lea.vmem %s1, %s286
        %p288 = pneg %p80
        %p289 = pneg %p77
        %p290 = pneg %p101
        %p291 = pneg %p98
        %p292 = pneg %p122
        %p293 = pneg %p119
        %p294 = pneg %p143
        %p295 = pneg %p140
        %p296 = pneg %p164
        %p297 = pneg %p161
        %p298 = pneg %p185
        %p299 = pneg %p182
        %p300 = pneg %p211
        %p301 = pneg %p208
        %s302 = smul.u32 4, %s24
        %p303 = scmp.lt.s32.totalorder %s23, 0
        %s304 = scalar_select %p303, %s23, 0
        %p305 = scmp.lt.s32.totalorder %s302, 15
        %s306 = scalar_select %p305, %s302, 15
        %s307 = smul.addr %s304, 16
        %s308 = sadd.s32 %s306, %s307
        %s309 = scalar_lea.vmem %s0, %s308
        %s310 = smul.u32 4, %s24
        %s311 = smul.u32 64, %s24
        %p312 = scmp.lt.s32.totalorder %s311, 255
        %s313 = scalar_select %p312, %s311, 255
        %s314 = smul.addr %s313, 4
        %s315 = scalar_lea.vmem %s1, %s314
        %s316 = smul.u32 64, %s24
        %p318 = scmp.eq.s32.totalorder %s24, 0
        // Predicated region
        $region49: #{sp_mlp_classifier_forward.1} parent=47 // pred_check
          %p319 = pneg %p318
        $region50: #{sp_mlp_classifier_forward.1} parent=47 // pred_check_branch
          %321 = sbr.rel (%p319) target = $region52
        $region51: #{sp_mlp_classifier_forward.1} parent=47 // pred_region
          %322 = vst [vmem:[#allocation2] sm:$0x3] 0.0
        $region52: #{sp_mlp_classifier_forward.1} parent=47 // pred_fallthru
          _
        %v323 = vld [vmem:[#allocation2] sm:$0x3]
        %v324 = vld [vmem:[%s309] sm:$0xf]
        %v325 = vld [vmem:[%s315] sm:$0xf]
        %v326 = vld [vmem:[%s315 + $0x4] sm:$0xf]
        %v327 = vld [vmem:[%s315 + $0x8] sm:$0xf]
        %v328 = vld [vmem:[%s315 + $0xc] sm:$0xf]
        %v329 = vld [vmem:[%s315 + $0x10] sm:$0xf]
        %v330 = vld [vmem:[%s315 + $0x14] sm:$0xf]
        %v331 = vld [vmem:[%s315 + $0x18] sm:$0xf]
        %v332 = vld [vmem:[%s315 + $0x1c] sm:$0xf]
        %v333 = vld [vmem:[%s315 + $0x20] sm:$0xf]
        %v334 = vld [vmem:[%s315 + $0x24] sm:$0xf]
        %v335 = vld [vmem:[%s315 + $0x28] sm:$0xf]
        %v336 = vld [vmem:[%s315 + $0x2c] sm:$0xf]
        %v337 = vld [vmem:[%s315 + $0x30] sm:$0xf]
        %v338 = vld [vmem:[%s315 + $0x34] sm:$0xf]
        %v339 = vld [vmem:[%s315 + $0x38] sm:$0xf]
        %v340 = vld [vmem:[%s315 + $0x3c] sm:$0xf]
        %v341 = vld [vmem:[%s315 + $0x40] sm:$0xf]
        %v342 = vld [vmem:[%s315 + $0x44] sm:$0xf]
        %v343 = vld [vmem:[%s315 + $0x48] sm:$0xf]
        %v344 = vld [vmem:[%s315 + $0x4c] sm:$0xf]
        %v345 = vld [vmem:[%s315 + $0x50] sm:$0xf]
        %v346 = vld [vmem:[%s315 + $0x54] sm:$0xf]
        %v347 = vld [vmem:[%s315 + $0x58] sm:$0xf]
        %v348 = vld [vmem:[%s315 + $0x5c] sm:$0xf]
        %v349 = vld [vmem:[%s315 + $0x60] sm:$0xf]
        %v350 = vld [vmem:[%s315 + $0x64] sm:$0xf]
        %v351 = vld [vmem:[%s315 + $0x68] sm:$0xf]
        %v352 = vld [vmem:[%s315 + $0x6c] sm:$0xf]
        %v353 = vld [vmem:[%s315 + $0x70] sm:$0xf]
        %v354 = vld [vmem:[%s315 + $0x74] sm:$0xf]
        %v355 = vld [vmem:[%s315 + $0x78] sm:$0xf]
        %v356 = vld [vmem:[%s315 + $0x7c] sm:$0xf]
        %v357 = vld [vmem:[%s315 + $0x80] sm:$0xf]
        %v358 = vld [vmem:[%s315 + $0x84] sm:$0xf]
        %v359 = vld [vmem:[%s315 + $0x88] sm:$0xf]
        %v360 = vld [vmem:[%s315 + $0x8c] sm:$0xf]
        %v361 = vld [vmem:[%s315 + $0x90] sm:$0xf]
        %v362 = vld [vmem:[%s315 + $0x94] sm:$0xf]
        %v363 = vld [vmem:[%s315 + $0x98] sm:$0xf]
        %v364 = vld [vmem:[%s315 + $0x9c] sm:$0xf]
        %v365 = vld [vmem:[%s315 + $0xa0] sm:$0xf]
        %v366 = vld [vmem:[%s315 + $0xa4] sm:$0xf]
        %v367 = vld [vmem:[%s315 + $0xa8] sm:$0xf]
        %v368 = vld [vmem:[%s315 + $0xac] sm:$0xf]
        %v369 = vld [vmem:[%s315 + $0xb0] sm:$0xf]
        %v370 = vld [vmem:[%s315 + $0xb4] sm:$0xf]
        %v371 = vld [vmem:[%s315 + $0xb8] sm:$0xf]
        %v372 = vld [vmem:[%s315 + $0xbc] sm:$0xf]
        %v373 = vld [vmem:[%s315 + $0xc0] sm:$0xf]
        %v374 = vld [vmem:[%s315 + $0xc4] sm:$0xf]
        %v375 = vld [vmem:[%s315 + $0xc8] sm:$0xf]
        %v376 = vld [vmem:[%s315 + $0xcc] sm:$0xf]
        %v377 = vld [vmem:[%s315 + $0xd0] sm:$0xf]
        %v378 = vld [vmem:[%s315 + $0xd4] sm:$0xf]
        %v379 = vld [vmem:[%s315 + $0xd8] sm:$0xf]
        %v380 = vld [vmem:[%s315 + $0xdc] sm:$0xf]
        %v381 = vld [vmem:[%s315 + $0xe0] sm:$0xf]
        %v382 = vld [vmem:[%s315 + $0xe4] sm:$0xf]
        %v383 = vld [vmem:[%s315 + $0xe8] sm:$0xf]
        %v384 = vld [vmem:[%s315 + $0xec] sm:$0xf]
        %v385 = vld [vmem:[%s315 + $0xf0] sm:$0xf]
        %v386 = vld [vmem:[%s315 + $0xf4] sm:$0xf]
        %v387 = vld [vmem:[%s315 + $0xf8] sm:$0xf]
        %v388 = vld [vmem:[%s315 + $0xfc] sm:$0xf]
        %v391 = vunpack.c.l.s4 1966171168
        %v392 = vunpack.c.0.s8 %v391
        %v393 = vlaneseq
        %v394 = vshrl.u32 %v393, 7
        %v395 = vsub.s32 %v392, %v394
        %v396 = vrot.slane %v324, %v395
        %v397 = vcombine.high %v396, %v396
        %v399 = vunpack.c.l.s4 1966171168
        %v400 = vunpack.c.0.s8 %v399
        %v401 = vlaneseq
        %v402 = vshrl.u32 %v401, 7
        %v403 = vsub.s32 %v400, %v402
        %v404 = vrot.slane %v396, %v403
        %v406 = vunpack.c.l.s4 1966171168
        %v407 = vunpack.c.0.s8 %v406
        %v408 = vlaneseq
        %v409 = vshrl.u32 %v408, 7
        %v410 = vsub.s32 %v407, %v409
        %v411 = vrot.slane %v397, %v410
        %v412 = vcombine.high %v404, %v404
        %v413 = vcombine.high %v411, %v411
        %v482 = vunpack.c.l.b16 %v325
        %v483 = vunpack.c.l.b16 %v326
        %v484 = vunpack.c.l.b16 %v327
        %v485 = vunpack.c.l.b16 %v328
        %v486 = vunpack.c.l.b16 %v329
        %v487 = vunpack.c.l.b16 %v330
        %v488 = vunpack.c.l.b16 %v331
        %v489 = vunpack.c.l.b16 %v332
        %v490 = vunpack.c.l.b16 %v333
        %v491 = vunpack.c.l.b16 %v334
        %v492 = vunpack.c.l.b16 %v335
        %v493 = vunpack.c.l.b16 %v336
        %v494 = vunpack.c.l.b16 %v337
        %v495 = vunpack.c.l.b16 %v338
        %v496 = vunpack.c.l.b16 %v339
        %v497 = vunpack.c.l.b16 %v340
        %v498 = vunpack.c.l.b16 %v341
        %v499 = vunpack.c.l.b16 %v342
        %v500 = vunpack.c.l.b16 %v343
        %v501 = vunpack.c.l.b16 %v344
        %v502 = vunpack.c.l.b16 %v345
        %v503 = vunpack.c.l.b16 %v346
        %v504 = vunpack.c.l.b16 %v347
        %v505 = vunpack.c.l.b16 %v348
        %v506 = vunpack.c.l.b16 %v349
        %v507 = vunpack.c.l.b16 %v350
        %v508 = vunpack.c.l.b16 %v351
        %v509 = vunpack.c.l.b16 %v352
        %v510 = vunpack.c.l.b16 %v353
        %v511 = vunpack.c.l.b16 %v354
        %v512 = vunpack.c.l.b16 %v355
        %v513 = vunpack.c.l.b16 %v356
        %v514 = vunpack.c.l.b16 %v357
        %v515 = vunpack.c.l.b16 %v358
        %v516 = vunpack.c.l.b16 %v359
        %v517 = vunpack.c.l.b16 %v360
        %v518 = vunpack.c.l.b16 %v361
        %v519 = vunpack.c.l.b16 %v362
        %v520 = vunpack.c.l.b16 %v363
        %v521 = vunpack.c.l.b16 %v364
        %v522 = vunpack.c.l.b16 %v365
        %v523 = vunpack.c.l.b16 %v366
        %v524 = vunpack.c.l.b16 %v367
        %v525 = vunpack.c.l.b16 %v368
        %v526 = vunpack.c.l.b16 %v369
        %v527 = vunpack.c.l.b16 %v370
        %v528 = vunpack.c.l.b16 %v371
        %v529 = vunpack.c.l.b16 %v372
        %v530 = vunpack.c.l.b16 %v373
        %v531 = vunpack.c.l.b16 %v374
        %v532 = vunpack.c.l.b16 %v375
        %v533 = vunpack.c.l.b16 %v376
        %v534 = vunpack.c.l.b16 %v377
        %v535 = vunpack.c.l.b16 %v378
        %v536 = vunpack.c.l.b16 %v379
        %v537 = vunpack.c.l.b16 %v380
        %v538 = vunpack.c.l.b16 %v381
        %v539 = vunpack.c.l.b16 %v382
        %v540 = vunpack.c.l.b16 %v383
        %v541 = vunpack.c.l.b16 %v384
        %v542 = vunpack.c.l.b16 %v385
        %v543 = vunpack.c.l.b16 %v386
        %v544 = vunpack.c.l.b16 %v387
        %v545 = vunpack.c.l.b16 %v388
        %v546 = vpack.c.b16 %v483, %v482
        %v547 = vpack.c.b16 %v485, %v484
        %v548 = vpack.c.b16 %v487, %v486
        %v549 = vpack.c.b16 %v489, %v488
        %v550 = vpack.c.b16 %v491, %v490
        %v551 = vpack.c.b16 %v493, %v492
        %v552 = vpack.c.b16 %v495, %v494
        %v553 = vpack.c.b16 %v497, %v496
        %v554 = vpack.c.b16 %v499, %v498
        %v555 = vpack.c.b16 %v501, %v500
        %v556 = vpack.c.b16 %v503, %v502
        %v557 = vpack.c.b16 %v505, %v504
        %v558 = vpack.c.b16 %v507, %v506
        %v559 = vpack.c.b16 %v509, %v508
        %v560 = vpack.c.b16 %v511, %v510
        %v561 = vpack.c.b16 %v513, %v512
        %v562 = vpack.c.b16 %v515, %v514
        %v563 = vpack.c.b16 %v517, %v516
        %v564 = vpack.c.b16 %v519, %v518
        %v565 = vpack.c.b16 %v521, %v520
        %v566 = vpack.c.b16 %v523, %v522
        %v567 = vpack.c.b16 %v525, %v524
        %v568 = vpack.c.b16 %v527, %v526
        %v569 = vpack.c.b16 %v529, %v528
        %v570 = vpack.c.b16 %v531, %v530
        %v571 = vpack.c.b16 %v533, %v532
        %v572 = vpack.c.b16 %v535, %v534
        %v573 = vpack.c.b16 %v537, %v536
        %v574 = vpack.c.b16 %v539, %v538
        %v575 = vpack.c.b16 %v541, %v540
        %v576 = vpack.c.b16 %v543, %v542
        %v577 = vpack.c.b16 %v545, %v544
        %610 = vmatprep.subr.bf16.mxu0 0
        %611 = vmatpush1.bf16.msra.mxu0 %v546
        %612 = vmatprep.subr.bf16.mxu0 0
        %613 = vmatpush1.bf16.msra.mxu0 %v547
        %614 = vmatprep.subr.bf16.mxu0 0
        %615 = vmatpush1.bf16.msra.mxu0 %v548
        %616 = vmatprep.subr.bf16.mxu0 0
        %617 = vmatpush1.bf16.msra.mxu0 %v549
        %618 = vmatprep.subr.bf16.mxu0 0
        %619 = vmatpush1.bf16.msra.mxu0 %v550
        %620 = vmatprep.subr.bf16.mxu0 0
        %621 = vmatpush1.bf16.msra.mxu0 %v551
        %622 = vmatprep.subr.bf16.mxu0 0
        %623 = vmatpush1.bf16.msra.mxu0 %v552
        %624 = vmatprep.subr.bf16.mxu0 0
        %625 = vmatpush1.bf16.msra.mxu0 %v553
        %626 = vmatprep.subr.bf16.mxu0 0
        %627 = vmatpush1.bf16.msra.mxu0 %v554
        %628 = vmatprep.subr.bf16.mxu0 0
        %629 = vmatpush1.bf16.msra.mxu0 %v555
        %630 = vmatprep.subr.bf16.mxu0 0
        %631 = vmatpush1.bf16.msra.mxu0 %v556
        %632 = vmatprep.subr.bf16.mxu0 0
        %633 = vmatpush1.bf16.msra.mxu0 %v557
        %634 = vmatprep.subr.bf16.mxu0 0
        %635 = vmatpush1.bf16.msra.mxu0 %v558
        %636 = vmatprep.subr.bf16.mxu0 0
        %637 = vmatpush1.bf16.msra.mxu0 %v559
        %638 = vmatprep.subr.bf16.mxu0 0
        %639 = vmatpush1.bf16.msra.mxu0 %v560
        %640 = vmatprep.subr.bf16.mxu0 0
        %641 = vmatpush1.bf16.msra.mxu0 %v561
        %642 = vmatprep.mubr.bf16.mxu0 %v411
        %643 = vmatmul.mubr.bf16.gmra.mrb[0].mxu0 %v404
        %v644 = vpop.f32.mrb[0].mxu0
        %v645 = vadd.f32 0.0, %v644
        %v646 = vpop.f32.mrb[0].mxu0
        %v647 = vpop.f32.mrb[0].mxu0
        %v648 = vpop.f32.mrb[0].mxu0
        %649 = vdwg.mxu0
        %650 = vmatprep.subr.bf16.mxu0 0
        %651 = vmatpush1.bf16.msra.mxu0 %v562
        %652 = vmatprep.subr.bf16.mxu0 0
        %653 = vmatpush1.bf16.msra.mxu0 %v563
        %654 = vmatprep.subr.bf16.mxu0 0
        %655 = vmatpush1.bf16.msra.mxu0 %v564
        %656 = vmatprep.subr.bf16.mxu0 0
        %657 = vmatpush1.bf16.msra.mxu0 %v565
        %658 = vmatprep.subr.bf16.mxu0 0
        %659 = vmatpush1.bf16.msra.mxu0 %v566
        %660 = vmatprep.subr.bf16.mxu0 0
        %661 = vmatpush1.bf16.msra.mxu0 %v567
        %662 = vmatprep.subr.bf16.mxu0 0
        %663 = vmatpush1.bf16.msra.mxu0 %v568
        %664 = vmatprep.subr.bf16.mxu0 0
        %665 = vmatpush1.bf16.msra.mxu0 %v569
        %666 = vmatprep.subr.bf16.mxu0 0
        %667 = vmatpush1.bf16.msra.mxu0 %v570
        %668 = vmatprep.subr.bf16.mxu0 0
        %669 = vmatpush1.bf16.msra.mxu0 %v571
        %670 = vmatprep.subr.bf16.mxu0 0
        %671 = vmatpush1.bf16.msra.mxu0 %v572
        %672 = vmatprep.subr.bf16.mxu0 0
        %673 = vmatpush1.bf16.msra.mxu0 %v573
        %674 = vmatprep.subr.bf16.mxu0 0
        %675 = vmatpush1.bf16.msra.mxu0 %v574
        %676 = vmatprep.subr.bf16.mxu0 0
        %677 = vmatpush1.bf16.msra.mxu0 %v575
        %678 = vmatprep.subr.bf16.mxu0 0
        %679 = vmatpush1.bf16.msra.mxu0 %v576
        %680 = vmatprep.subr.bf16.mxu0 0
        %681 = vmatpush1.bf16.msra.mxu0 %v577
        %682 = vmatprep.mubr.bf16.mxu0 %v413
        %683 = vmatmul.mubr.bf16.gmra.mrb[0].mxu0 %v412
        %v684 = vpop.f32.mrb[0].mxu0
        %v685 = vadd.f32 %v645, %v684
        %v686 = vpop.f32.mrb[0].mxu0
        %v687 = vpop.f32.mrb[0].mxu0
        %v688 = vpop.f32.mrb[0].mxu0
        %689 = vdwg.mxu0
        %v690 = vadd.f32 %v323, %v685
        %691 = vst [vmem:[#allocation2] sm:$0x3] %v690
        %p692 = scmp.eq.s32.totalorder %s24, 3
        // Predicated region
        $region53: #{sp_mlp_classifier_forward.1} parent=47 // pred_check
          %p693 = pneg %p692
        $region54: #{sp_mlp_classifier_forward.1} parent=47 // pred_check_branch
          %695 = sbr.rel (%p693) target = $region56
        $region55: #{sp_mlp_classifier_forward.1} parent=47 // pred_region
          %v696 = vld [vmem:[#allocation2] sm:$0x3]
          %v697 = vld [vmem:[%s2] sm:$0x1]
          %v699 = vlaneseq
          %v700 = vshrl.u32 %v699, 7
          %v701 = vsub.s32 0, %v700
          %v702 = vrot.slane %v697, %v701
          %v704 = vadd.f32 %v696, %v702
          %v705 = vmax.f32 %v704, 0.0
          %v706 = vld [vmem:[%s3] sm:$0xff]
          %v707 = vld [vmem:[%s3 + $0x8] sm:$0xff]
          %v708 = vld [vmem:[%s3 + $0x10] sm:$0xff]
          %v709 = vld [vmem:[%s3 + $0x18] sm:$0xff]
          %v710 = vld [vmem:[%s3 + $0x20] sm:$0xff]
          %v711 = vld [vmem:[%s3 + $0x28] sm:$0xff]
          %v712 = vld [vmem:[%s3 + $0x30] sm:$0xff]
          %v713 = vld [vmem:[%s3 + $0x38] sm:$0xff]
          %v714 = vld [vmem:[%s3 + $0x40] sm:$0xff]
          %v715 = vld [vmem:[%s3 + $0x48] sm:$0xff]
          %v716 = vld [vmem:[%s3 + $0x50] sm:$0xff]
          %v717 = vld [vmem:[%s3 + $0x58] sm:$0xff]
          %v718 = vld [vmem:[%s3 + $0x60] sm:$0xff]
          %v719 = vld [vmem:[%s3 + $0x68] sm:$0xff]
          %v720 = vld [vmem:[%s3 + $0x70] sm:$0xff]
          %v721 = vld [vmem:[%s3 + $0x78] sm:$0xff]
          %v722 = vld [vmem:[%s4] sm:$0x1]
          %v724 = vlaneseq
          %v725 = vshrl.u32 %v724, 7
          %v726 = vsub.s32 0, %v725
          %v727 = vrot.slane %v722, %v726
          %729 = vmatprep.subr.mxu0 0.0
          %730 = vmatpush1.msra.mxu0 %v706
          %731 = vmatprep.subr.mxu0 0.0
          %732 = vmatpush1.msra.mxu0 %v707
          %733 = vmatprep.subr.mxu0 0.0
          %734 = vmatpush1.msra.mxu0 %v708
          %735 = vmatprep.subr.mxu0 0.0
          %736 = vmatpush1.msra.mxu0 %v709
          %737 = vmatprep.subr.mxu0 0.0
          %738 = vmatpush1.msra.mxu0 %v710
          %739 = vmatprep.subr.mxu0 0.0
          %740 = vmatpush1.msra.mxu0 %v711
          %741 = vmatprep.subr.mxu0 0.0
          %742 = vmatpush1.msra.mxu0 %v712
          %743 = vmatprep.subr.mxu0 0.0
          %744 = vmatpush1.msra.mxu0 %v713
          %745 = vmatprep.subr.mxu0 0.0
          %746 = vmatpush1.msra.mxu0 %v714
          %747 = vmatprep.subr.mxu0 0.0
          %748 = vmatpush1.msra.mxu0 %v715
          %749 = vmatprep.subr.mxu0 0.0
          %750 = vmatpush1.msra.mxu0 %v716
          %751 = vmatprep.subr.mxu0 0.0
          %752 = vmatpush1.msra.mxu0 %v717
          %753 = vmatprep.subr.mxu0 0.0
          %754 = vmatpush1.msra.mxu0 %v718
          %755 = vmatprep.subr.mxu0 0.0
          %756 = vmatpush1.msra.mxu0 %v719
          %757 = vmatprep.subr.mxu0 0.0
          %758 = vmatpush1.msra.mxu0 %v720
          %759 = vmatprep.subr.mxu0 0.0
          %760 = vmatpush1.msra.mxu0 %v721
          %761 = vmatprep.subr.mxu0 0.0
          %762 = vmatpush1.msra.mxu0 0.0
          %763 = vmatprep.subr.mxu0 0.0
          %764 = vmatpush1.msra.mxu0 0.0
          %765 = vmatprep.subr.mxu0 0.0
          %766 = vmatpush1.msra.mxu0 0.0
          %767 = vmatprep.subr.mxu0 0.0
          %768 = vmatpush1.msra.mxu0 0.0
          %769 = vmatprep.subr.mxu0 0.0
          %770 = vmatpush1.msra.mxu0 0.0
          %771 = vmatprep.subr.mxu0 0.0
          %772 = vmatpush1.msra.mxu0 0.0
          %773 = vmatprep.subr.mxu0 0.0
          %774 = vmatpush1.msra.mxu0 0.0
          %775 = vmatprep.subr.mxu0 0.0
          %776 = vmatpush1.msra.mxu0 0.0
          %777 = vmatprep.subr.mxu0 0.0
          %778 = vmatpush1.msra.mxu0 0.0
          %779 = vmatprep.subr.mxu0 0.0
          %780 = vmatpush1.msra.mxu0 0.0
          %781 = vmatprep.subr.mxu0 0.0
          %782 = vmatpush1.msra.mxu0 0.0
          %783 = vmatprep.subr.mxu0 0.0
          %784 = vmatpush1.msra.mxu0 0.0
          %785 = vmatprep.subr.mxu0 0.0
          %786 = vmatpush1.msra.mxu0 0.0
          %787 = vmatprep.subr.mxu0 0.0
          %788 = vmatpush1.msra.mxu0 0.0
          %789 = vmatprep.subr.mxu0 0.0
          %790 = vmatpush1.msra.mxu0 0.0
          %791 = vmatprep.subr.mxu0 0.0
          %792 = vmatpush1.msra.mxu0 0.0
          %793 = vmatprep.mubr.f32.mxu0 0.0
          %794 = vmatmul.mubr.f32.gmra.mrb[0].mxu0 %v705
          %v795 = vpop.f32.mrb[0].mxu0
          %v796 = vadd.f32 %v727, %v795
          %v797 = vpop.f32.mrb[0].mxu0
          %798 = vdwg.mxu0
          %v799 = vmax.f32 %v796, 0.0
          %v800 = vld [vmem:[%s5] sm:$0xff]
          %v801 = vld [vmem:[%s5 + $0x8] sm:$0xff]
          %v802 = vld [vmem:[%s5 + $0x10] sm:$0xff]
          %v803 = vld [vmem:[%s5 + $0x18] sm:$0xff]
          %v804 = vld [vmem:[%s5 + $0x20] sm:$0xff]
          %v805 = vld [vmem:[%s5 + $0x28] sm:$0xff]
          %v806 = vld [vmem:[%s5 + $0x30] sm:$0xff]
          %v807 = vld [vmem:[%s5 + $0x38] sm:$0xff]
          %v808 = vld [vmem:[%s6] sm:$0x1]
          %v810 = vlaneseq
          %v811 = vshrl.u32 %v810, 7
          %v812 = vsub.s32 0, %v811
          %v813 = vrot.slane %v808, %v812
          %vm815 = vcmask 523264
          %v817 = vsel %vm815, %v799, 0
          %819 = vmatprep.subr.mxu0 0.0
          %820 = vmatpush1.msra.mxu0 %v800
          %821 = vmatprep.subr.mxu0 0.0
          %822 = vmatpush1.msra.mxu0 %v801
          %823 = vmatprep.subr.mxu0 0.0
          %824 = vmatpush1.msra.mxu0 %v802
          %825 = vmatprep.subr.mxu0 0.0
          %826 = vmatpush1.msra.mxu0 %v803
          %827 = vmatprep.subr.mxu0 0.0
          %828 = vmatpush1.msra.mxu0 %v804
          %829 = vmatprep.subr.mxu0 0.0
          %830 = vmatpush1.msra.mxu0 %v805
          %831 = vmatprep.subr.mxu0 0.0
          %832 = vmatpush1.msra.mxu0 %v806
          %833 = vmatprep.subr.mxu0 0.0
          %834 = vmatpush1.msra.mxu0 %v807
          %835 = vmatprep.subr.mxu0 0.0
          %836 = vmatpush1.msra.mxu0 0.0
          %837 = vmatprep.subr.mxu0 0.0
          %838 = vmatpush1.msra.mxu0 0.0
          %839 = vmatprep.subr.mxu0 0.0
          %840 = vmatpush1.msra.mxu0 0.0
          %841 = vmatprep.subr.mxu0 0.0
          %842 = vmatpush1.msra.mxu0 0.0
          %843 = vmatprep.subr.mxu0 0.0
          %844 = vmatpush1.msra.mxu0 0.0
          %845 = vmatprep.subr.mxu0 0.0
          %846 = vmatpush1.msra.mxu0 0.0
          %847 = vmatprep.subr.mxu0 0.0
          %848 = vmatpush1.msra.mxu0 0.0
          %849 = vmatprep.subr.mxu0 0.0
          %850 = vmatpush1.msra.mxu0 0.0
          %851 = vmatprep.subr.mxu0 0.0
          %852 = vmatpush1.msra.mxu0 0.0
          %853 = vmatprep.subr.mxu0 0.0
          %854 = vmatpush1.msra.mxu0 0.0
          %855 = vmatprep.subr.mxu0 0.0
          %856 = vmatpush1.msra.mxu0 0.0
          %857 = vmatprep.subr.mxu0 0.0
          %858 = vmatpush1.msra.mxu0 0.0
          %859 = vmatprep.subr.mxu0 0.0
          %860 = vmatpush1.msra.mxu0 0.0
          %861 = vmatprep.subr.mxu0 0.0
          %862 = vmatpush1.msra.mxu0 0.0
          %863 = vmatprep.subr.mxu0 0.0
          %864 = vmatpush1.msra.mxu0 0.0
          %865 = vmatprep.subr.mxu0 0.0
          %866 = vmatpush1.msra.mxu0 0.0
          %867 = vmatprep.subr.mxu0 0.0
          %868 = vmatpush1.msra.mxu0 0.0
          %869 = vmatprep.subr.mxu0 0.0
          %870 = vmatpush1.msra.mxu0 0.0
          %871 = vmatprep.subr.mxu0 0.0
          %872 = vmatpush1.msra.mxu0 0.0
          %873 = vmatprep.subr.mxu0 0.0
          %874 = vmatpush1.msra.mxu0 0.0
          %875 = vmatprep.subr.mxu0 0.0
          %876 = vmatpush1.msra.mxu0 0.0
          %877 = vmatprep.subr.mxu0 0.0
          %878 = vmatpush1.msra.mxu0 0.0
          %879 = vmatprep.subr.mxu0 0.0
          %880 = vmatpush1.msra.mxu0 0.0
          %881 = vmatprep.subr.mxu0 0.0
          %882 = vmatpush1.msra.mxu0 0.0
          %883 = vmatprep.mubr.f32.mxu0 0.0
          %884 = vmatmul.mubr.f32.gmra.mrb[0].mxu0 %v817
          %v885 = vpop.f32.mrb[0].mxu0
          %v886 = vadd.f32 %v813, %v885
          %v887 = vpop.f32.mrb[0].mxu0
          %888 = vdwg.mxu0
          %v889 = vmul.f32 %v886, %v886
          %vm890 = vcmask 33792
          %v891 = vsel %vm890, %v889, 0.0
          %892 = vadd.xlane.f32.xlu0 %v891
          %v893 = vpop.xlane.xlu0 %892
          %v894 = vmax.f32 %v893, 1e-24
          %v895 = vrsqrt.pop %v894
          %v896 = vmul.f32 %v886, %v895
          %897 = vst.msk [vmem:[#allocation3] sm:$0x3] %vm890, %v896
        $region56: #{sp_mlp_classifier_forward.1} parent=47 // pred_fallthru
          _
        // Predicated region
        $region57: #{sp_mlp_classifier_forward.1} parent=47 // pred_check
          %p898 = pneg %p208
        $region58: #{sp_mlp_classifier_forward.1} parent=47 // pred_check_branch
          %900 = sbr.rel (%p898) target = $region60
        $region59: #{sp_mlp_classifier_forward.1} parent=47 // pred_region
          %s902 = ssub.s32 32, 32
          %903 = vsyncadd [#allocation4], %s902
          %s904 = smul.addr %s23, 32
          %s905 = scalar_lea.hbm %s7, %s904
          %s907 = sshll.u32 [#allocation3], 4
          %s908 = int_to_ptr.vmem [resolvable:$true] %s907
          %910 = dma.vmem_to_hbm [thread:$0]  %s908, 32, %s905, [#allocation4]
        $region60: #{sp_mlp_classifier_forward.1} parent=47 // pred_fallthru
          _
        // Predicated region
        $region61: #{sp_mlp_classifier_forward.1} parent=47 // pred_check
          %p911 = pneg %p208
        $region62: #{sp_mlp_classifier_forward.1} parent=47 // pred_check_branch
          %913 = sbr.rel (%p911) target = $region64
        $region63: #{sp_mlp_classifier_forward.1} parent=47 // pred_region
          %914 = dma.done [#allocation4], 32
        $region64: #{sp_mlp_classifier_forward.1} parent=47 // pred_fallthru
          _
      $region48: #{sp_mlp_classifier_forward.1} parent=5 // pred_fallthru
        _
      %p915 = scmp.le.s32.totalorder 2, %s14
      // Predicated region
      $region65: #{sp_mlp_classifier_forward.1} parent=5 // pred_check
        %p916 = pneg %p915
      $region66: #{sp_mlp_classifier_forward.1} parent=5 // pred_check_branch
        %918 = sbr.rel (%p916) target = $region68
      $region67: #{sp_mlp_classifier_forward.1} parent=5 // pred_region
        %s919 = ssub.s32 %s14, 2
      $region68: #{sp_mlp_classifier_forward.1} parent=5 // pred_fallthru
        _
    $region6: #{sp_mlp_classifier_forward.1} parent=1 // loop_footer
      %s18 = sadd.s32 1, %s14
    $region7: #{sp_mlp_classifier_forward.1} parent=1 // loop_footer_branch
      %13 = sbr.rel target = $region3
    $region8: #{sp_mlp_classifier_forward.1} parent=1 // loop_exit
      _
    %920 = vsyncpa [#allocation4], 1
    %s921 = scalar_lea.sflag [#allocation4], 1
    %922 = vsyncpa %s921, 1

</llo_original>
